<compile_context>
chip_gen: v6e
topology: v6e:2x2x1
jax: 0.10.0
libtpu: 0.0.40
codegen_flags: <defaults>
</compile_context>

<pallas_src>
import functools

import jax
import jax.numpy as jnp
from jax.experimental import pallas as pl
from jax.experimental.pallas import tpu as pltpu

_LANE = 128
_SUB = 16  # bf16 sublane tile


def _round_up(x, m):
    return ((x + m - 1) // m) * m


def _pad2d(x, rows, cols):
    return jnp.pad(x, ((0, rows - x.shape[0]), (0, cols - x.shape[1])))


def _elu(v):
    # ELU(alpha=1.0) in fp32; expm1(min(v,0)) keeps inf out of the exp.
    return jnp.where(v > 0, v, jnp.expm1(jnp.minimum(v, 0.0)))


# --------------------------------------------------------------------------
# Transform kernel: HW = H @ W  (row-blocked, bf16 in, fp32 acc, bf16 out).
# --------------------------------------------------------------------------
def _transform_kernel(h_ref, w_ref, out_ref):
    out_ref[...] = jnp.dot(h_ref[...], w_ref[...],
                           preferred_element_type=jnp.float32).astype(out_ref.dtype)


def _transform(h, w):
    rows, c_in = h.shape
    c_out = w.shape[1]
    # Keep the double-buffered (tm, c_in) slab under ~8 MiB.
    # TODO(synk): k-tile this transform for extremely wide feature matrices.
    max_tm = max(_SUB, (((8 << 20) // max(1, 4 * c_in)) // _SUB) * _SUB)
    tm = max(_SUB, min(256, max_tm, rows))
    rows_p = _round_up(rows, tm)
    h_p = _pad2d(h, rows_p, c_in) if rows_p != rows else h

    out = pl.pallas_call(
        _transform_kernel,
        out_shape=jax.ShapeDtypeStruct((rows_p, c_out), jnp.bfloat16),
        grid_spec=pltpu.PrefetchScalarGridSpec(
            num_scalar_prefetch=0,
            grid=(rows_p // tm,),
            in_specs=[pl.BlockSpec((tm, c_in), lambda i: (i, 0)),
                      pl.BlockSpec((c_in, c_out), lambda i: (0, 0))],
            out_specs=pl.BlockSpec((tm, c_out), lambda i: (i, 0)),
        ),
        compiler_params=pltpu.CompilerParams(dimension_semantics=("parallel",)),
        cost_estimate=pl.CostEstimate(
            flops=2 * rows_p * c_in * c_out, transcendentals=0,
            bytes_accessed=rows_p * c_in * 2 + c_in * c_out * 2 + rows_p * c_out * 2),
    )(h_p, w)
    return out[:rows] if rows_p != rows else out


# --------------------------------------------------------------------------
# Fused path: all three layers in one kernel, A_hat resident in VMEM (1 HBM read).
# --------------------------------------------------------------------------
def _fused_kernel(hw1_ref, w2_ref, w3_ref, b1_ref, b2_ref, b3_ref, a_hbm,
                  out_ref, a_vmem, h_scr, hw_scr, copy_sem, *, num_classes):
    layer = pl.program_id(0)

    @pl.when(layer == 0)
    def _():
        # One-time copy of A_hat HBM -> single-buffered VMEM scratch.
        cp = pltpu.make_async_copy(a_hbm, a_vmem, copy_sem.at[0])
        cp.start()
        cp.wait()
        hw_scr[...] = hw1_ref[...]                       # layer-1 operand = X @ W1

    @pl.when(layer == 1)
    def _():
        hw_scr[...] = jnp.dot(h_scr[...], w2_ref[...],
                              preferred_element_type=jnp.float32).astype(jnp.bfloat16)

    @pl.when(layer == 2)
    def _():
        hw_scr[...] = jnp.dot(h_scr[...], w3_ref[...],
                              preferred_element_type=jnp.float32).astype(jnp.bfloat16)

    # Dominant aggregation: A_hat @ HW, contracting over the node dim (fp32 acc).
    agg = jnp.dot(a_vmem[...], hw_scr[...], preferred_element_type=jnp.float32)

    # dropout(p=0.4) with training=False is the identity.
    # TODO(synk): training-mode dropout needs pltpu.prng_seed/prng_random_bits
    #             masks plus 1/(1-p) scaling.
    @pl.when(layer == 0)
    def _():
        h_scr[...] = _elu(agg + b1_ref[...]).astype(jnp.bfloat16)

    @pl.when(layer == 1)
    def _():
        h_scr[...] = _elu(agg + b2_ref[...]).astype(jnp.bfloat16)

    @pl.when(layer == 2)
    def _():
        z = _elu(agg + b3_ref[...])
        col = jax.lax.broadcasted_iota(jnp.int32, z.shape, 1)
        z = jnp.where(col < num_classes, z, -1e30)       # mask padded class lanes
        m = jnp.max(z, axis=-1, keepdims=True)
        s = z - m
        lse = jnp.log(jnp.sum(jnp.exp(s), axis=-1, keepdims=True))
        out_ref[...] = (s - lse).astype(out_ref.dtype)


def _fused_vmem_bytes(n_pad, c):
    a_bytes = n_pad * _round_up(n_pad, _LANE) * 2        # resident A scratch (bf16)
    work = n_pad * c * 32                                # scratches, in/out bufs, fp32 temps
    return a_bytes + work + (2 << 20)


def _fused_layers(a_p, hw1, w2, w3, b1, b2, b3, *, num_classes):
    n_pad = a_p.shape[0]
    c = hw1.shape[1]
    est = _fused_vmem_bytes(n_pad, c)
    vmem_limit = int(min(max(est, 16 << 20), 40 << 20))

    kernel = functools.partial(_fused_kernel, num_classes=num_classes)
    flops = 3 * 2 * n_pad * n_pad * c + 2 * 2 * n_pad * c * c
    bytes_accessed = (n_pad * n_pad * 2 + n_pad * c * 2 + n_pad * c * 4
                      + 2 * c * c * 2 + 3 * c * 4)

    return pl.pallas_call(
        kernel,
        out_shape=jax.ShapeDtypeStruct((n_pad, c), jnp.float32),
        grid_spec=pltpu.PrefetchScalarGridSpec(
            num_scalar_prefetch=0,
            grid=(3,),                                   # one step per GCN layer
            in_specs=[
                pl.BlockSpec((n_pad, c), lambda l: (0, 0)),   # HW1 = X @ W1
                pl.BlockSpec((c, c), lambda l: (0, 0)),       # W2
                pl.BlockSpec((c, c), lambda l: (0, 0)),       # W3
                pl.BlockSpec((1, c), lambda l: (0, 0)),       # b1
                pl.BlockSpec((1, c), lambda l: (0, 0)),       # b2
                pl.BlockSpec((1, c), lambda l: (0, 0)),       # b3
                pl.BlockSpec(memory_space=pl.ANY),            # A_hat stays in HBM
            ],
            out_specs=pl.BlockSpec((n_pad, c), lambda l: (0, 0)),
            scratch_shapes=[
                pltpu.VMEM((n_pad, n_pad), jnp.bfloat16),     # resident A_hat
                pltpu.VMEM((n_pad, c), jnp.bfloat16),         # h (layer activations)
                pltpu.VMEM((n_pad, c), jnp.bfloat16),         # hw (aggregation operand)
                pltpu.SemaphoreType.DMA((1,)),
            ],
        ),
        compiler_params=pltpu.CompilerParams(
            dimension_semantics=("arbitrary",),          # layers are sequential
            vmem_limit_bytes=vmem_limit,
        ),
        cost_estimate=pl.CostEstimate(flops=flops, transcendentals=4 * n_pad * c,
                                      bytes_accessed=bytes_accessed),
    )(hw1, w2, w3, b1, b2, b3, a_p)


# --------------------------------------------------------------------------
# Streaming fallback: per-layer aggregation with (rows, k) grid + fp32 accumulator.
# --------------------------------------------------------------------------
def _aggregate_kernel(a_ref, hw_ref, b_ref, out_ref, acc_ref, *, num_classes,
                      is_output_layer):
    k = pl.program_id(1)

    @pl.when(k == 0)
    def _():
        acc_ref[...] = jnp.zeros_like(acc_ref)

    acc_ref[...] += jnp.dot(a_ref[...], hw_ref[...],
                            preferred_element_type=jnp.float32)

    @pl.when(k == pl.num_programs(1) - 1)
    def _():
        z = _elu(acc_ref[...] + b_ref[...])
        if is_output_layer:
            col = jax.lax.broadcasted_iota(jnp.int32, z.shape, 1)
            z = jnp.where(col < num_classes, z, -1e30)
            m = jnp.max(z, axis=-1, keepdims=True)
            s = z - m
            lse = jnp.log(jnp.sum(jnp.exp(s), axis=-1, keepdims=True))
            out_ref[...] = (s - lse).astype(out_ref.dtype)
        else:
            out_ref[...] = z.astype(out_ref.dtype)


def _aggregate(a_p, hw_p, b_p, *, tm, tk, num_classes=0, is_output_layer=False):
    n_rows, n_k = a_p.shape
    c = hw_p.shape[1]
    out_dtype = jnp.float32 if is_output_layer else jnp.bfloat16
    out_isz = 4 if is_output_layer else 2

    raw = (2 * tm * tk * 2 + 2 * tk * c * 2 + 2 * c * 4
           + 2 * tm * c * out_isz + tm * c * 4)
    vmem_limit = int(min(max(4 * raw, 16 << 20), 40 << 20))

    kernel = functools.partial(_aggregate_kernel, num_classes=num_classes,
                               is_output_layer=is_output_layer)
    flops = 2 * n_rows * n_k * c
    bytes_accessed = n_rows * n_k * 2 + n_k * c * 2 + c * 4 + n_rows * c * out_isz

    return pl.pallas_call(
        kernel,
        out_shape=jax.ShapeDtypeStruct((n_rows, c), out_dtype),
        grid_spec=pltpu.PrefetchScalarGridSpec(
            num_scalar_prefetch=0,
            grid=(n_rows // tm, n_k // tk),
            in_specs=[
                pl.BlockSpec((tm, tk), lambda i, k: (i, k)),   # A_hat tile
                pl.BlockSpec((tk, c), lambda i, k: (k, 0)),    # HW k-slab
                pl.BlockSpec((1, c), lambda i, k: (0, 0)),     # bias
            ],
            out_specs=pl.BlockSpec((tm, c), lambda i, k: (i, 0)),
            scratch_shapes=[pltpu.VMEM((tm, c), jnp.float32)],
        ),
        compiler_params=pltpu.CompilerParams(
            dimension_semantics=("parallel", "arbitrary"),
            vmem_limit_bytes=vmem_limit,
        ),
        cost_estimate=pl.CostEstimate(
            flops=flops,
            transcendentals=n_rows * c * (2 if is_output_layer else 1),
            bytes_accessed=bytes_accessed),
    )(a_p, hw_p, b_p)


# --------------------------------------------------------------------------
# Forward pass.
# --------------------------------------------------------------------------
def gcn_forward(a_hat, x, params, *, force_streaming=False):
    n, f = x.shape
    hidden = params["w1"].shape[1]
    num_classes = params["w3"].shape[1]

    c = max(_round_up(hidden, _LANE), _round_up(num_classes, _LANE))
    f_pad = _round_up(f, _LANE)

    w1 = _pad2d(params["w1"], f_pad, c).astype(jnp.bfloat16)
    w2 = _pad2d(params["w2"], c, c).astype(jnp.bfloat16)
    w3 = _pad2d(params["w3"], c, c).astype(jnp.bfloat16)
    b1 = _pad2d(params["b1"], 1, c).astype(jnp.float32)
    b2 = _pad2d(params["b2"], 1, c).astype(jnp.float32)
    b3 = _pad2d(params["b3"], 1, c).astype(jnp.float32)

    n_pad = _round_up(n, _SUB)
    use_fused = (not force_streaming) and _fused_vmem_bytes(n_pad, c) <= (38 << 20)

    if use_fused:
        a_p = _pad2d(a_hat, n_pad, n_pad).astype(jnp.bfloat16)
        x_p = _pad2d(x, n_pad, f_pad).astype(jnp.bfloat16)
        hw1 = _transform(x_p, w1)                          # X @ W1  (small matmul)
        out = _fused_layers(a_p, hw1, w2, w3, b1, b2, b3, num_classes=num_classes)
        return out[:n, :num_classes]

    # Streaming fallback for graphs whose A_hat does not fit the VMEM budget.
    t = max(_SUB, min(512, _round_up(n, _SUB)))
    n_s = _round_up(n, t)
    a_p = _pad2d(a_hat, n_s, n_s).astype(jnp.bfloat16)
    h = _pad2d(x, n_s, f_pad).astype(jnp.bfloat16)
    h = _aggregate(a_p, _transform(h, w1), b1, tm=t, tk=t)                 # conv1+elu
    h = _aggregate(a_p, _transform(h, w2), b2, tm=t, tk=t)                 # conv2+elu
    out = _aggregate(a_p, _transform(h, w3), b3, tm=t, tk=t,
                     num_classes=num_classes, is_output_layer=True)        # conv3+elu+logsoftmax
    return out[:n, :num_classes]


# --------------------------------------------------------------------------
# Host-side helpers (graph preprocessing, params, fp32 reference).
# --------------------------------------------------------------------------
def build_normalized_adjacency(edge_index, num_nodes):
    """Dense A_hat = D^-1/2 (A + I) D^-1/2, matching PyG gcn_norm semantics
    (duplicate edges sum; self loops added only where missing)."""
    src = edge_index[0]
    dst = edge_index[1]
    adj = jnp.zeros((num_nodes, num_nodes), jnp.float32).at[dst, src].add(1.0)
    idx = jnp.arange(num_nodes)
    diag = adj[idx, idx]
    adj = adj.at[idx, idx].set(jnp.where(diag > 0, diag, 1.0))
    deg = jnp.sum(adj, axis=1)
    d_inv_sqrt = jnp.where(deg > 0, jax.lax.rsqrt(deg), 0.0)
    return adj * d_inv_sqrt[:, None] * d_inv_sqrt[None, :]


def init_params(key, num_node_features, num_classes, hidden=16):
    """Deterministic glorot-style init for the three GCNConv layers."""
    ks = jax.random.split(key, 3)

    def glorot(k, fan_in, fan_out):
        limit = jnp.sqrt(6.0 / (fan_in + fan_out))
        return jax.random.uniform(k, (fan_in, fan_out), jnp.float32, -limit, limit)

    return {
        "w1": glorot(ks[0], num_node_features, hidden),
        "b1": jnp.zeros((1, hidden), jnp.float32),
        "w2": glorot(ks[1], hidden, hidden),
        "b2": jnp.zeros((1, hidden), jnp.float32),
        "w3": glorot(ks[2], hidden, num_classes),
        "b3": jnp.zeros((1, num_classes), jnp.float32),
    }


def gcn_reference(a_hat, x, params):
    """Pure-JAX fp32 reference of the same forward pass (ELU also after conv3,
    as in the torch module)."""
    def layer(h, w, b):
        return a_hat @ (h @ w) + b
    h = jax.nn.elu(layer(x, params["w1"], params["b1"]))
    h = jax.nn.elu(layer(h, params["w2"], params["b2"]))
    h = jax.nn.elu(layer(h, params["w3"], params["b3"]))
    return jax.nn.log_softmax(h, axis=1)


if __name__ == "__main__":
    num_nodes = 32
    num_node_features = 8
    num_classes = 4
    num_edges = 64

    key = jax.random.PRNGKey(0)
    k_x, k_e, k_p = jax.random.split(key, 3)

    # node feature matrix data.x : [N, F]
    x = jax.random.normal(k_x, (num_nodes, num_node_features), jnp.float32)
    # data.edge_index : [2, E]
    edge_index = jax.random.randint(k_e, (2, num_edges), 0, num_nodes, jnp.int32)

    a_hat = build_normalized_adjacency(edge_index, num_nodes)
    params = init_params(k_p, num_node_features, num_classes)

    ref = gcn_reference(a_hat, x, params)

    # Fused (A_hat-resident) path — the default for small/medium graphs.
    out_fused = jax.block_until_ready(gcn_forward(a_hat, x, params))
    # Streaming k-tiled path — exercised explicitly so both code paths are tested.
    out_stream = jax.block_until_ready(
        gcn_forward(a_hat, x, params, force_streaming=True))

    for out in (out_fused, out_stream):
        assert out.shape == (num_nodes, num_classes)
        # rows of log_softmax must exp-sum to 1
        assert jnp.allclose(jnp.sum(jnp.exp(out), axis=1), 1.0, atol=1e-4)
        # bf16-compute kernels vs fp32 reference
        assert jnp.max(jnp.abs(out - ref)) < 0.15

    print("KERNEL_OK")
</pallas_src>

<mosaic_0001>
module attributes {stable_mosaic.version = 11 : i64} {
  func.func @_transform_kernel(%arg0: i32, %arg1: memref<32x128xbf16, #tpu.memory_space<vmem>>, %arg2: memref<128x128xbf16, #tpu.memory_space<vmem>>, %arg3: memref<32x128xbf16, #tpu.memory_space<vmem>>) attributes {dimension_semantics = [#tpu.dimension_semantics<parallel>], iteration_bounds = array<i64: 1>, scalar_prefetch = 0 : i64, scratch_operands = 0 : i64, tpu.core_type = #tpu.core_type<tc>, window_params = [{transform_indices = @transform_0, window_bounds = array<i64: 32, 128>}, {pipeline_mode = #tpu.pipeline_mode<synchronous>, transform_indices = @transform_1, window_bounds = array<i64: 128, 128>}, {transform_indices = @transform_2, window_bounds = array<i64: 32, 128>}]} {
    %c0 = arith.constant 0 : index
    %c0_0 = arith.constant 0 : index
    %0 = vector.load %arg1[%c0, %c0_0] : memref<32x128xbf16, #tpu.memory_space<vmem>>, vector<32x128xbf16>
    %c0_1 = arith.constant 0 : index
    %c0_2 = arith.constant 0 : index
    %1 = vector.load %arg2[%c0_1, %c0_2] : memref<128x128xbf16, #tpu.memory_space<vmem>>, vector<128x128xbf16>
    %cst = arith.constant dense<0.000000e+00> : vector<32x128xf32>
    %2 = tpu.matmul %0, %1, %cst {dimension_numbers = #tpu.dot_dimension_numbers<[1], [0], [0], [1], [0, 0, 1, 1], [], []>} : vector<32x128xbf16>, vector<128x128xbf16>, vector<32x128xf32> -> vector<32x128xf32>
    %3 = arith.truncf %2 : vector<32x128xf32> to vector<32x128xbf16>
    %c0_3 = arith.constant 0 : index
    %c0_4 = arith.constant 0 : index
    %4 = vector.load %arg3[%c0_3, %c0_4] : memref<32x128xbf16, #tpu.memory_space<vmem>>, vector<32x128xbf16>
    tpu.vector_store %arg3[%c0_3, %c0_4], %3 {strides = array<i32>} : memref<32x128xbf16, #tpu.memory_space<vmem>>, vector<32x128xbf16>,
    return
  }
  func.func @transform_0(%arg0: i32) -> (i32, i32) {
    %c0_i32 = arith.constant 0 : i32
    %c0_i32_0 = arith.constant 0 : i32
    return %arg0, %c0_i32 : i32, i32
  }
  func.func @transform_1(%arg0: i32) -> (i32, i32) {
    %c0_i32 = arith.constant 0 : i32
    %c0_i32_0 = arith.constant 0 : i32
    %c0_i32_1 = arith.constant 0 : i32
    return %c0_i32, %c0_i32_0 : i32, i32
  }
  func.func @transform_2(%arg0: i32) -> (i32, i32) {
    %c0_i32 = arith.constant 0 : i32
    %c0_i32_0 = arith.constant 0 : i32
    return %arg0, %c0_i32 : i32, i32
  }
}

</mosaic_0001>

<llo_original>
// kernel: tpu_custom_call.1
$region0: #{tpu_custom_call.1}
  #allocation0 [shape = 'u32[]', space=smem, size = 0x4, offset = 0x4, fixed_abs, tag = 'smem constant byte address 0x4 - core index']
  #allocation1 [shape = 'u32[144,128]{1,0:T(1,128)}', space=vmem, size = 0x12000, scoped, tag = 'internal scratch']
  %s0 = inlined_call_operand.hbm [shape: bf16[32,128], index: 0, kind: input, shape index: {}]
  %s1 = inlined_call_operand.hbm [shape: bf16[128,128], index: 1, kind: input, shape index: {}]
  %s2 = inlined_call_operand.hbm [shape: bf16[32,128], index: 2, kind: output, shape index: {}]
  %s3 = sld [smem:[#allocation0]]
  $region26: #{tpu_custom_call.1} parent=0
    _
  %s5 = ssub.s32 1, %s3
  %s6 = scalar_select 0, %s5, %s3
  $region1: #{tpu_custom_call.1} parent=0
    #allocation2 [shape = 'u8[8192]{0}', space=vmem, size = 0x2000, scoped, tag = 'input window, operand 0, single buffered']
    #allocation3 [shape = 's32[1]{0}', space=sflag, size = 0x4, scoped, tag = 'scoped memory for tpu_custom_call.1']
    #allocation4 [shape = 's32[1]{0}', space=sflag, size = 0x4, scoped, tag = 'scoped memory for tpu_custom_call.1']
    #allocation5 [shape = 'u8[32768]{0}', space=vmem, size = 0x8000, scoped, tag = 'input window, operand 1, single buffered']
    #allocation6 [shape = 's32[1]{0}', space=sflag, size = 0x4, scoped, tag = 'scoped memory for tpu_custom_call.1']
    #allocation7 [shape = 'u8[8192]{0}', space=vmem, size = 0x2000, scoped, tag = 'output window, operand 0, single buffered']
    %7 = vsyncpa [#allocation3], 0
    %8 = vsyncpa [#allocation6], 0
    %9 = vsyncpa [#allocation4], 0
    // Predicated region
    $region2: #{tpu_custom_call.1} parent=1 // pred_check
      _
    $region3: #{tpu_custom_call.1} parent=1 // pred_check_branch
      %11 = sbr.rel (0) target = $region5
    $region4: #{tpu_custom_call.1} parent=1 // pred_region
      %s13 = ssub.s32 256, 256
      %14 = vsyncadd [#allocation3], %s13
      %s15 = sshll.u32 [#allocation2], 4
      %s16 = int_to_ptr.vmem [resolvable:$true] %s15
      %21 = dma.hbm_to_vmem [thread:$0]  %s0, 256, %s16, [#allocation3], 64, 64, 4
    $region5: #{tpu_custom_call.1} parent=1 // pred_fallthru
      _
    // Predicated region
    $region6: #{tpu_custom_call.1} parent=1 // pred_check
      _
    $region7: #{tpu_custom_call.1} parent=1 // pred_check_branch
      %23 = sbr.rel (0) target = $region9
    $region8: #{tpu_custom_call.1} parent=1 // pred_region
      %s25 = ssub.s32 1024, 1024
      %26 = vsyncadd [#allocation6], %s25
      %s27 = sshll.u32 [#allocation5], 4
      %s28 = int_to_ptr.vmem [resolvable:$true] %s27
      %33 = dma.hbm_to_vmem [thread:$0]  %s1, 1024, %s28, [#allocation6], 64, 64, 4
    $region9: #{tpu_custom_call.1} parent=1 // pred_fallthru
      _
    // Predicated region
    $region10: #{tpu_custom_call.1} parent=1 // pred_check
      _
    $region11: #{tpu_custom_call.1} parent=1 // pred_check_branch
      %35 = sbr.rel (0) target = $region13
    $region12: #{tpu_custom_call.1} parent=1 // pred_region
      %36 = dma.done [#allocation3], 256
    $region13: #{tpu_custom_call.1} parent=1 // pred_fallthru
      _
    // Predicated region
    $region14: #{tpu_custom_call.1} parent=1 // pred_check
      _
    $region15: #{tpu_custom_call.1} parent=1 // pred_check_branch
      %38 = sbr.rel (0) target = $region17
    $region16: #{tpu_custom_call.1} parent=1 // pred_region
      %39 = dma.done [#allocation6], 1024
    $region17: #{tpu_custom_call.1} parent=1 // pred_fallthru
      _
    %v41 = vld [vmem:[#allocation2] sm:$0xf]
    %v42 = vld [vmem:[#allocation2 + $0x4] sm:$0xf]
    %v43 = vld [vmem:[#allocation2 + $0x8] sm:$0xf]
    %v44 = vld [vmem:[#allocation2 + $0xc] sm:$0xf]
    %v45 = vld [vmem:[#allocation5] sm:$0xf]
    %v46 = vld [vmem:[#allocation5 + $0x4] sm:$0xf]
    %v47 = vld [vmem:[#allocation5 + $0x8] sm:$0xf]
    %v48 = vld [vmem:[#allocation5 + $0xc] sm:$0xf]
    %v49 = vld [vmem:[#allocation5 + $0x10] sm:$0xf]
    %v50 = vld [vmem:[#allocation5 + $0x14] sm:$0xf]
    %v51 = vld [vmem:[#allocation5 + $0x18] sm:$0xf]
    %v52 = vld [vmem:[#allocation5 + $0x1c] sm:$0xf]
    %v53 = vld [vmem:[#allocation5 + $0x20] sm:$0xf]
    %v54 = vld [vmem:[#allocation5 + $0x24] sm:$0xf]
    %v55 = vld [vmem:[#allocation5 + $0x28] sm:$0xf]
    %v56 = vld [vmem:[#allocation5 + $0x2c] sm:$0xf]
    %v57 = vld [vmem:[#allocation5 + $0x30] sm:$0xf]
    %v58 = vld [vmem:[#allocation5 + $0x34] sm:$0xf]
    %v59 = vld [vmem:[#allocation5 + $0x38] sm:$0xf]
    %v60 = vld [vmem:[#allocation5 + $0x3c] sm:$0xf]
    %v65 = vunpack.c.l.b16 %v41
    %v66 = vunpack.c.l.b16 %v42
    %v67 = vunpack.c.l.b16 %v43
    %v68 = vunpack.c.l.b16 %v44
    %v69 = vpack.c.b16 %v66, %v65
    %v70 = vpack.c.b16 %v68, %v67
    %v89 = vunpack.c.l.b16 %v45
    %v90 = vunpack.c.l.b16 %v46
    %v91 = vunpack.c.l.b16 %v47
    %v92 = vunpack.c.l.b16 %v48
    %v93 = vunpack.c.l.b16 %v49
    %v94 = vunpack.c.l.b16 %v50
    %v95 = vunpack.c.l.b16 %v51
    %v96 = vunpack.c.l.b16 %v52
    %v97 = vunpack.c.l.b16 %v53
    %v98 = vunpack.c.l.b16 %v54
    %v99 = vunpack.c.l.b16 %v55
    %v100 = vunpack.c.l.b16 %v56
    %v101 = vunpack.c.l.b16 %v57
    %v102 = vunpack.c.l.b16 %v58
    %v103 = vunpack.c.l.b16 %v59
    %v104 = vunpack.c.l.b16 %v60
    %v105 = vpack.c.b16 %v90, %v89
    %v106 = vpack.c.b16 %v92, %v91
    %v107 = vpack.c.b16 %v94, %v93
    %v108 = vpack.c.b16 %v96, %v95
    %v109 = vpack.c.b16 %v98, %v97
    %v110 = vpack.c.b16 %v100, %v99
    %v111 = vpack.c.b16 %v102, %v101
    %v112 = vpack.c.b16 %v104, %v103
    %121 = vmatprep.subr.bf16.mxu0 0
    %122 = vmatpush1.bf16.msra.mxu0 %v112
    %123 = vmatprep.subr.bf16.mxu0 0
    %124 = vmatpush1.bf16.msra.mxu0 %v111
    %125 = vmatprep.subr.bf16.mxu0 0
    %126 = vmatpush1.bf16.msra.mxu0 %v110
    %127 = vmatprep.subr.bf16.mxu0 0
    %128 = vmatpush1.bf16.msra.mxu0 %v109
    %129 = vmatprep.subr.bf16.mxu0 0
    %130 = vmatpush1.bf16.msra.mxu0 %v108
    %131 = vmatprep.subr.bf16.mxu0 0
    %132 = vmatpush1.bf16.msra.mxu0 %v107
    %133 = vmatprep.subr.bf16.mxu0 0
    %134 = vmatpush1.bf16.msra.mxu0 %v106
    %135 = vmatprep.subr.bf16.mxu0 0
    %136 = vmatpush1.bf16.msra.mxu0 %v105
    %137 = vmatprep.subr.bf16.mxu0 0
    %138 = vmatpush2.bf16.msra.mxu0 0
    %139 = vmatprep.subr.bf16.mxu0 0
    %140 = vmatpush2.bf16.msra.mxu0 0
    %141 = vmatprep.subr.bf16.mxu0 0
    %142 = vmatpush2.bf16.msra.mxu0 0
    %143 = vmatprep.subr.bf16.mxu0 0
    %144 = vmatpush2.bf16.msra.mxu0 0
    %145 = vmatprep.subr.bf16.mxu0 0
    %146 = vmatpush2.bf16.msra.mxu0 0
    %147 = vmatprep.subr.bf16.mxu0 0
    %148 = vmatpush2.bf16.msra.mxu0 0
    %149 = vmatprep.subr.bf16.mxu0 0
    %150 = vmatpush2.bf16.msra.mxu0 0
    %151 = vmatprep.subr.bf16.mxu0 0
    %152 = vmatpush2.bf16.msra.mxu0 0
    %153 = vmatprep.mubr.bf16.mxu0 0
    %154 = vmatmul.mubr.bf16.gmra.mxu0 %v69
    %v155 = vpop.f32.mrf.mxu0
    %v156 = vadd.f32 0.0, %v155
    %v157 = vpop.f32.mrf.mxu0
    %v158 = vpop.f32.mrf.mxu0
    %v159 = vadd.f32 0.0, %v158
    %v160 = vpop.f32.mrf.mxu0
    %161 = vmatprep.mubr.bf16.mxu0 0
    %162 = vmatmul.mubr.bf16.gmra.mxu0 %v70
    %v163 = vpop.f32.mrf.mxu0
    %v164 = vadd.f32 0.0, %v163
    %v165 = vpop.f32.mrf.mxu0
    %v166 = vpop.f32.mrf.mxu0
    %v167 = vadd.f32 0.0, %v166
    %v168 = vpop.f32.mrf.mxu0
    %169 = vdwg.mxu0
    %v170 = vpack.c.bf16 %v159, %v156
    %v171 = vpack.c.bf16 %v167, %v164
    %v174 = vunpack.c.l.b16 %v170
    %v175 = vunpack.c.h.b16 %v170
    %v176 = vunpack.c.l.b16 %v171
    %v177 = vunpack.c.h.b16 %v171
    %v178 = vpack.c.b16 %v174, %v174
    %v179 = vpack.c.b16 %v175, %v175
    %v180 = vpack.c.b16 %v176, %v176
    %v181 = vpack.c.b16 %v177, %v177
    %186 = vst [vmem:[#allocation7] sm:$0xf] %v178
    %187 = vst [vmem:[#allocation7 + $0x4] sm:$0xf] %v179
    %188 = vst [vmem:[#allocation7 + $0x8] sm:$0xf] %v180
    %189 = vst [vmem:[#allocation7 + $0xc] sm:$0xf] %v181
    // Predicated region
    $region18: #{tpu_custom_call.1} parent=1 // pred_check
      _
    $region19: #{tpu_custom_call.1} parent=1 // pred_check_branch
      %191 = sbr.rel (0) target = $region21
    $region20: #{tpu_custom_call.1} parent=1 // pred_region
      %s193 = ssub.s32 256, 256
      %194 = vsyncadd [#allocation4], %s193
      %s195 = sshll.u32 [#allocation7], 4
      %s196 = int_to_ptr.vmem [resolvable:$true] %s195
      %201 = dma.vmem_to_hbm [thread:$0]  %s196, 256, %s2, [#allocation4], 64, 64, 4
    $region21: #{tpu_custom_call.1} parent=1 // pred_fallthru
      _
    // Predicated region
    $region22: #{tpu_custom_call.1} parent=1 // pred_check
      _
    $region23: #{tpu_custom_call.1} parent=1 // pred_check_branch
      %203 = sbr.rel (0) target = $region25
    $region24: #{tpu_custom_call.1} parent=1 // pred_region
      %204 = dma.done [#allocation4], 256
    $region25: #{tpu_custom_call.1} parent=1 // pred_fallthru
      _
    %205 = vsyncpa [#allocation3], 1
    %206 = vsyncpa [#allocation6], 1
    %207 = vsyncpa [#allocation4], 1

</llo_original>
